<compile_context>
chip_gen: v7x
topology: tpu7x:2x2x1
jax: 0.10.0
libtpu: 0.0.40
codegen_flags: <defaults>
</compile_context>

<pallas_src>
import jax
import jax.numpy as jnp
from jax.experimental import pallas as pl
from jax.experimental.pallas import tpu as pltpu

_LANES = 128


def _twin_critic_kernel(x_ref, w1_ref, b1_ref, w2_ref, b2_ref, w3_ref, b3_ref,
                        o_ref):
    # One grid step = one Q head on one batch tile.
    x = x_ref[...].astype(jnp.bfloat16)                          # (bt, D_in)

    # layer 1 / layer 4: (bt, D_in) @ (D_in, 400) on the MXU, f32 accumulate.
    h = jnp.dot(x, w1_ref[...], preferred_element_type=jnp.float32) + b1_ref[...]
    h = jnp.maximum(h, 0.0)

    # layer 2 / layer 5: (bt, 400) @ (400, 300), bf16 in, f32 accumulate.
    h = jnp.dot(h.astype(jnp.bfloat16), w2_ref[...],
                preferred_element_type=jnp.float32) + b2_ref[...]
    h = jnp.maximum(h, 0.0)

    # layer 3 / layer 6: output width 1 -> multiply + cross-lane reduce (f32),
    # instead of an MXU pass that would only use a single output column.
    q = jnp.sum(h * w3_ref[...], axis=-1, keepdims=True) + b3_ref[...]  # (bt, 1)

    # Lane-dense store: replicate across the 128 lanes; wrapper reads lane 0.
    o_ref[...] = jnp.broadcast_to(q, o_ref.shape)


def pack_params(params):
    """Stack the two heads and cast the big matmul weights to bf16.

    `params` holds f32 master weights: w* as (in, out), b* as (1, out).
    """
    bf16 = jnp.bfloat16
    return {
        "w1s": jnp.stack([params["w1"], params["w4"]]).astype(bf16),  # (2, D_in, 400)
        "b1s": jnp.stack([params["b1"], params["b4"]]),               # (2, 1, 400) f32
        "w2s": jnp.stack([params["w2"], params["w5"]]).astype(bf16),  # (2, 400, 300)
        "b2s": jnp.stack([params["b2"], params["b5"]]),               # (2, 1, 300) f32
        "w3s": jnp.stack([params["w3"].T, params["w6"].T]),           # (2, 1, 300) f32
        "b3s": jnp.stack([params["b3"], params["b6"]]),               # (2, 1, 1)   f32
    }


def _choose_batch_tiling(B):
    """Return (bt, padded_B) for the batch axis."""
    for cand in (512, 256, 128):
        if B >= cand and B % cand == 0:
            return cand, B
    if B <= 1024:
        # One tile holding the whole (possibly odd-sized) batch; block shape
        # equals the full array dim so the (8, 128) rule is satisfied.
        return B, B
    # Large, awkward batch: pad to a multiple of 256 and tile at 256.
    padded = ((B + 255) // 256) * 256
    return 256, padded


@jax.jit
def twin_critic_forward(observation_action, packed):
    x = observation_action.astype(jnp.float32)
    B, d_in = x.shape
    h1 = packed["w1s"].shape[-1]   # 400
    h2 = packed["w2s"].shape[-1]   # 300

    bt, Bp = _choose_batch_tiling(B)
    if Bp != B:
        x = jnp.pad(x, ((0, Bp - B), (0, 0)))
    nb = Bp // bt

    out = pl.pallas_call(
        _twin_critic_kernel,
        out_shape=jax.ShapeDtypeStruct((2, Bp, _LANES), jnp.float32),
        grid=(2, nb),                                  # (head, batch_tile)
        in_specs=[
            pl.BlockSpec((bt, d_in), lambda h, i: (i, 0)),
            pl.BlockSpec((None, d_in, h1), lambda h, i: (h, 0, 0)),
            pl.BlockSpec((None, 1, h1), lambda h, i: (h, 0, 0)),
            pl.BlockSpec((None, h1, h2), lambda h, i: (h, 0, 0)),
            pl.BlockSpec((None, 1, h2), lambda h, i: (h, 0, 0)),
            pl.BlockSpec((None, 1, h2), lambda h, i: (h, 0, 0)),
            pl.BlockSpec((None, 1, 1), lambda h, i: (h, 0, 0)),
        ],
        out_specs=pl.BlockSpec((None, bt, _LANES), lambda h, i: (h, i, 0)),
        compiler_params=pltpu.CompilerParams(
            dimension_semantics=("parallel", "parallel"),
        ),
    )(x, packed["w1s"], packed["b1s"], packed["w2s"], packed["b2s"],
      packed["w3s"], packed["b3s"])

    q1 = out[0, :B, 0:1]
    q2 = out[1, :B, 0:1]
    return q1, q2


def init_twin_critic_params(observation_size, action_size, key):
    """PyTorch nn.Linear default init: U(-1/sqrt(fan_in), 1/sqrt(fan_in)).
    Weights stored transposed: (in_features, out_features)."""
    in_dim = observation_size + action_size
    dims = [
        ("1", in_dim, 400), ("2", 400, 300), ("3", 300, 1),
        ("4", in_dim, 400), ("5", 400, 300), ("6", 300, 1),
    ]
    params = {}
    keys = jax.random.split(key, 2 * len(dims))
    for idx, (name, fan_in, fan_out) in enumerate(dims):
        bound = 1.0 / jnp.sqrt(jnp.float32(fan_in))
        wk, bk = keys[2 * idx], keys[2 * idx + 1]
        params[f"w{name}"] = jax.random.uniform(
            wk, (fan_in, fan_out), jnp.float32, minval=-bound, maxval=bound)
        params[f"b{name}"] = jax.random.uniform(
            bk, (1, fan_out), jnp.float32, minval=-bound, maxval=bound)
    return params


def _reference_forward_f32(x, p):
    def head(wa, ba, wb, bb, wc, bc):
        h = jnp.maximum(x @ wa + ba, 0.0)
        h = jnp.maximum(h @ wb + bb, 0.0)
        return h @ wc + bc
    q1 = head(p["w1"], p["b1"], p["w2"], p["b2"], p["w3"], p["b3"])
    q2 = head(p["w4"], p["b4"], p["w5"], p["b5"], p["w6"], p["b6"])
    return q1, q2


def _reference_forward_bf16(x, p):
    # Mirrors the kernel's bf16 rounding of matmul inputs (f32 accumulation,
    # f32 bias/ReLU, f32 final projection).
    r = lambda v: v.astype(jnp.bfloat16).astype(jnp.float32)
    def head(wa, ba, wb, bb, wc, bc):
        h = jnp.maximum(r(x) @ r(wa) + ba, 0.0)
        h = jnp.maximum(r(h) @ r(wb) + bb, 0.0)
        return h @ wc + bc
    q1 = head(p["w1"], p["b1"], p["w2"], p["b2"], p["w3"], p["b3"])
    q2 = head(p["w4"], p["b4"], p["w5"], p["b5"], p["w6"], p["b6"])
    return q1, q2


if __name__ == "__main__":
    observation_size = 12
    action_size = 4
    batch = 8

    key = jax.random.PRNGKey(0)
    pkey, xkey = jax.random.split(key)
    params = init_twin_critic_params(observation_size, action_size, pkey)
    packed = pack_params(params)

    observation_action = jax.random.normal(
        xkey, (batch, observation_size + action_size), jnp.float32)

    q1, q2 = twin_critic_forward(observation_action, packed)
    q1 = jax.block_until_ready(q1)
    q2 = jax.block_until_ready(q2)
    assert q1.shape == (batch, 1) and q2.shape == (batch, 1)

    # Tight check against a reference that mirrors the bf16 weight rounding.
    r1, r2 = _reference_forward_bf16(observation_action, params)
    assert jnp.allclose(q1, r1, atol=2e-3, rtol=2e-3)
    assert jnp.allclose(q2, r2, atol=2e-3, rtol=2e-3)

    # Loose sanity check against the pure-f32 PyTorch-equivalent forward.
    f1, f2 = _reference_forward_f32(observation_action, params)
    assert jnp.allclose(q1, f1, atol=5e-2, rtol=5e-2)
    assert jnp.allclose(q2, f2, atol=5e-2, rtol=5e-2)

    print("KERNEL_OK")
</pallas_src>

<mosaic_0001>
module attributes {stable_mosaic.version = 11 : i64} {
  func.func @_twin_critic_kernel(%arg0: i32, %arg1: i32, %arg2: memref<8x16xf32, #tpu.memory_space<vmem>>, %arg3: memref<1x16x400xbf16, #tpu.memory_space<vmem>>, %arg4: memref<1x1x400xf32, #tpu.memory_space<vmem>>, %arg5: memref<1x400x300xbf16, #tpu.memory_space<vmem>>, %arg6: memref<1x1x300xf32, #tpu.memory_space<vmem>>, %arg7: memref<1x1x300xf32, #tpu.memory_space<vmem>>, %arg8: memref<1x1x1xf32, #tpu.memory_space<vmem>>, %arg9: memref<1x8x128xf32, #tpu.memory_space<vmem>>) attributes {dimension_semantics = [#tpu.dimension_semantics<parallel>, #tpu.dimension_semantics<parallel>], iteration_bounds = array<i64: 2, 1>, scalar_prefetch = 0 : i64, scratch_operands = 0 : i64, tpu.core_type = #tpu.core_type<tc>, window_params = [{transform_indices = @transform_0, window_bounds = array<i64: 8, 16>}, {transform_indices = @transform_1, window_bounds = array<i64: 1, 16, 400>}, {transform_indices = @transform_2, window_bounds = array<i64: 1, 1, 400>}, {transform_indices = @transform_3, window_bounds = array<i64: 1, 400, 300>}, {transform_indices = @transform_4, window_bounds = array<i64: 1, 1, 300>}, {transform_indices = @transform_5, window_bounds = array<i64: 1, 1, 300>}, {transform_indices = @transform_6, window_bounds = array<i64: 1, 1, 1>}, {transform_indices = @transform_7, window_bounds = array<i64: 1, 8, 128>}]} {
    %c0 = arith.constant 0 : index
    %c0_0 = arith.constant 0 : index
    %0 = vector.load %arg2[%c0, %c0_0] : memref<8x16xf32, #tpu.memory_space<vmem>>, vector<8x16xf32>
    %1 = arith.truncf %0 : vector<8x16xf32> to vector<8x16xbf16>
    %c0_1 = arith.constant 0 : index
    %c0_2 = arith.constant 0 : index
    %c0_3 = arith.constant 0 : index
    %2 = vector.load %arg3[%c0_1, %c0_2, %c0_3] : memref<1x16x400xbf16, #tpu.memory_space<vmem>>, vector<1x16x400xbf16>
    %3 = vector.shape_cast %2 : vector<1x16x400xbf16> to vector<16x400xbf16>
    %cst = arith.constant dense<0.000000e+00> : vector<8x400xf32>
    %4 = tpu.matmul %1, %3, %cst {dimension_numbers = #tpu.dot_dimension_numbers<[1], [0], [0], [1], [0, 0, 1, 1], [], []>} : vector<8x16xbf16>, vector<16x400xbf16>, vector<8x400xf32> -> vector<8x400xf32>
    %c0_4 = arith.constant 0 : index
    %c0_5 = arith.constant 0 : index
    %c0_6 = arith.constant 0 : index
    %5 = vector.load %arg4[%c0_4, %c0_5, %c0_6] : memref<1x1x400xf32, #tpu.memory_space<vmem>>, vector<1x1x400xf32>
    %6 = vector.shape_cast %5 : vector<1x1x400xf32> to vector<1x400xf32>
    %7 = vector.broadcast %6 : vector<1x400xf32> to vector<8x400xf32>
    %8 = arith.addf %4, %7 : vector<8x400xf32>
    %cst_7 = arith.constant 0.000000e+00 : f32
    %9 = vector.broadcast %cst_7 : f32 to vector<8x400xf32>
    %10 = arith.maximumf %8, %9 : vector<8x400xf32>
    %11 = arith.truncf %10 : vector<8x400xf32> to vector<8x400xbf16>
    %c0_8 = arith.constant 0 : index
    %c0_9 = arith.constant 0 : index
    %c0_10 = arith.constant 0 : index
    %12 = vector.load %arg5[%c0_8, %c0_9, %c0_10] : memref<1x400x300xbf16, #tpu.memory_space<vmem>>, vector<1x400x300xbf16>
    %13 = vector.shape_cast %12 : vector<1x400x300xbf16> to vector<400x300xbf16>
    %cst_11 = arith.constant dense<0.000000e+00> : vector<8x300xf32>
    %14 = tpu.matmul %11, %13, %cst_11 {dimension_numbers = #tpu.dot_dimension_numbers<[1], [0], [0], [1], [0, 0, 1, 1], [], []>} : vector<8x400xbf16>, vector<400x300xbf16>, vector<8x300xf32> -> vector<8x300xf32>
    %c0_12 = arith.constant 0 : index
    %c0_13 = arith.constant 0 : index
    %c0_14 = arith.constant 0 : index
    %15 = vector.load %arg6[%c0_12, %c0_13, %c0_14] : memref<1x1x300xf32, #tpu.memory_space<vmem>>, vector<1x1x300xf32>
    %16 = vector.shape_cast %15 : vector<1x1x300xf32> to vector<1x300xf32>
    %17 = vector.broadcast %16 : vector<1x300xf32> to vector<8x300xf32>
    %18 = arith.addf %14, %17 : vector<8x300xf32>
    %cst_15 = arith.constant 0.000000e+00 : f32
    %19 = vector.broadcast %cst_15 : f32 to vector<8x300xf32>
    %20 = arith.maximumf %18, %19 : vector<8x300xf32>
    %c0_16 = arith.constant 0 : index
    %c0_17 = arith.constant 0 : index
    %c0_18 = arith.constant 0 : index
    %21 = vector.load %arg7[%c0_16, %c0_17, %c0_18] : memref<1x1x300xf32, #tpu.memory_space<vmem>>, vector<1x1x300xf32>
    %22 = vector.shape_cast %21 : vector<1x1x300xf32> to vector<1x300xf32>
    %23 = vector.broadcast %22 : vector<1x300xf32> to vector<8x300xf32>
    %24 = arith.mulf %20, %23 : vector<8x300xf32>
    %cst_19 = arith.constant dense<0.000000e+00> : vector<8xf32>
    %25 = vector.multi_reduction <add>, %24, %cst_19 [1] : vector<8x300xf32> to vector<8xf32>
    %26 = vector.shape_cast %25 : vector<8xf32> to vector<8x1xf32>
    %c0_20 = arith.constant 0 : index
    %c0_21 = arith.constant 0 : index
    %c0_22 = arith.constant 0 : index
    %27 = vector.load %arg8[%c0_20, %c0_21, %c0_22] : memref<1x1x1xf32, #tpu.memory_space<vmem>>, vector<1x1x1xf32>
    %28 = vector.shape_cast %27 : vector<1x1x1xf32> to vector<1x1xf32>
    %29 = vector.broadcast %28 : vector<1x1xf32> to vector<8x1xf32>
    %30 = arith.addf %26, %29 : vector<8x1xf32>
    %31 = vector.shape_cast %30 : vector<8x1xf32> to vector<8x1xf32>
    %32 = vector.broadcast %31 : vector<8x1xf32> to vector<8x128xf32>
    %c0_23 = arith.constant 0 : index
    %c0_24 = arith.constant 0 : index
    %c0_25 = arith.constant 0 : index
    %33 = vector.load %arg9[%c0_23, %c0_24, %c0_25] : memref<1x8x128xf32, #tpu.memory_space<vmem>>, vector<1x8x128xf32>
    %34 = vector.shape_cast %33 : vector<1x8x128xf32> to vector<8x128xf32>
    %35 = vector.shape_cast %32 : vector<8x128xf32> to vector<1x8x128xf32>
    tpu.vector_store %arg9[%c0_23, %c0_24, %c0_25], %35 {strides = array<i32>} : memref<1x8x128xf32, #tpu.memory_space<vmem>>, vector<1x8x128xf32>,
    return
  }
  func.func @transform_0(%arg0: i32, %arg1: i32) -> (i32, i32) {
    %c0_i32 = arith.constant 0 : i32
    %c0_i32_0 = arith.constant 0 : i32
    return %arg1, %c0_i32 : i32, i32
  }
  func.func @transform_1(%arg0: i32, %arg1: i32) -> (i32, i32, i32) {
    %c0_i32 = arith.constant 0 : i32
    %c0_i32_0 = arith.constant 0 : i32
    %c0_i32_1 = arith.constant 0 : i32
    return %arg0, %c0_i32, %c0_i32_0 : i32, i32, i32
  }
  func.func @transform_2(%arg0: i32, %arg1: i32) -> (i32, i32, i32) {
    %c0_i32 = arith.constant 0 : i32
    %c0_i32_0 = arith.constant 0 : i32
    %c0_i32_1 = arith.constant 0 : i32
    return %arg0, %c0_i32, %c0_i32_0 : i32, i32, i32
  }
  func.func @transform_3(%arg0: i32, %arg1: i32) -> (i32, i32, i32) {
    %c0_i32 = arith.constant 0 : i32
    %c0_i32_0 = arith.constant 0 : i32
    %c0_i32_1 = arith.constant 0 : i32
    return %arg0, %c0_i32, %c0_i32_0 : i32, i32, i32
  }
  func.func @transform_4(%arg0: i32, %arg1: i32) -> (i32, i32, i32) {
    %c0_i32 = arith.constant 0 : i32
    %c0_i32_0 = arith.constant 0 : i32
    %c0_i32_1 = arith.constant 0 : i32
    return %arg0, %c0_i32, %c0_i32_0 : i32, i32, i32
  }
  func.func @transform_5(%arg0: i32, %arg1: i32) -> (i32, i32, i32) {
    %c0_i32 = arith.constant 0 : i32
    %c0_i32_0 = arith.constant 0 : i32
    %c0_i32_1 = arith.constant 0 : i32
    return %arg0, %c0_i32, %c0_i32_0 : i32, i32, i32
  }
  func.func @transform_6(%arg0: i32, %arg1: i32) -> (i32, i32, i32) {
    %c0_i32 = arith.constant 0 : i32
    %c0_i32_0 = arith.constant 0 : i32
    %c0_i32_1 = arith.constant 0 : i32
    return %arg0, %c0_i32, %c0_i32_0 : i32, i32, i32
  }
  func.func @transform_7(%arg0: i32, %arg1: i32) -> (i32, i32, i32) {
    %c0_i32 = arith.constant 0 : i32
    %c0_i32_0 = arith.constant 0 : i32
    return %arg0, %arg1, %c0_i32 : i32, i32, i32
  }
}

</mosaic_0001>

<llo_original>
// kernel: twin_critic_forward.1
$region0: #{twin_critic_forward.1}
  #allocation0 [shape = 'u32[]', space=smem, size = 0x4, offset = 0x4, fixed_abs, tag = 'smem constant byte address 0x4 - core index']
  #allocation1 [shape = 'u32[144,128]{1,0:T(1,128)}', space=vmem, size = 0x12000, scoped, tag = 'internal scratch']
  %s0 = inlined_call_operand.hbm [shape: f32[8,16], index: 0, kind: input, shape index: {}]
  %s1 = inlined_call_operand.hbm [shape: bf16[2,16,400], index: 1, kind: input, shape index: {}]
  %s2 = inlined_call_operand.hbm [shape: f32[2,1,400], index: 2, kind: input, shape index: {}]
  %s3 = inlined_call_operand.hbm [shape: bf16[2,400,300], index: 3, kind: input, shape index: {}]
  %s4 = inlined_call_operand.vmem [shape: f32[2,1,300], index: 4, kind: input, shape index: {}]
  %s5 = inlined_call_operand.vmem [shape: f32[2,1,300], index: 5, kind: input, shape index: {}]
  %s6 = inlined_call_operand.vmem [shape: f32[2,1,1], index: 6, kind: input, shape index: {}]
  %s7 = inlined_call_operand.vmem [shape: f32[2,8,128], index: 7, kind: output, shape index: {}]
  %s8 = sld [smem:[#allocation0]]
  $region77: #{twin_critic_forward.1} parent=0
    _
  %s10 = ssub.s32 1, %s8
  %s11 = scalar_select 0, %s10, %s8
  $region1: #{twin_critic_forward.1} parent=0
    #allocation2 [shape = 'u8[4096]{0}', space=vmem, size = 0x1000, scoped, tag = 'input window, operand 0, single buffered']
    #allocation3 [shape = 's32[2]{0}', space=sflag, size = 0x8, scoped, tag = 'scoped memory for twin_critic_forward.1']
    #allocation4 [shape = 'u8[32768]{0}', space=vmem, size = 0x8000, scoped, tag = 'input window, operand 1']
    #allocation5 [shape = 's32[2]{0}', space=sflag, size = 0x8, scoped, tag = 'scoped memory for twin_critic_forward.1']
    #allocation6 [shape = 'u8[4096]{0}', space=vmem, size = 0x1000, scoped, tag = 'input window, operand 2']
    #allocation7 [shape = 'u8[614400]{0}', space=vmem, size = 0x96000, scoped, tag = 'input window, operand 3']
    #allocation8 [shape = 's32[2]{0}', space=sflag, size = 0x8, scoped, tag = 'scoped memory for twin_critic_forward.1']
    %12 = vsyncpa [#allocation3], 0
    %13 = vsyncpa [#allocation5], 0
    %s14 = scalar_lea.sflag [#allocation5], 1
    %15 = vsyncpa %s14, 0
    %16 = vsyncpa [#allocation8], 0
    %s17 = scalar_lea.sflag [#allocation8], 1
    %18 = vsyncpa %s17, 0
    loop: start=0, step=1, limit=4
    $region2: #{twin_critic_forward.1} parent=1 // loop_pre_header
      _
    $region3: #{twin_critic_forward.1} parent=1 // loop_header
      %s20 = sphi 0, %s24
      %p21 = scmp.ge.s32.totalorder %s20, 4
      %s27 = sphi 0, %s39
      %s28 = sphi 0, %s35
      %s29 = sphi 0, %s27
      %s30 = sphi 0, %s28
      %s31 = sphi 0, %s29
      %s32 = sphi 0, %s30
      %s42 = sphi 0, %s44
      %s45 = sphi 0, %s42
      %s46 = sphi 0, %s45
      %s62 = sphi 0, %s46
      %s68 = sphi 0, %s70
      %s71 = sphi 0, %s68
      %s72 = sphi 0, %s71
      %s88 = sphi 0, %s72
      %s94 = sphi 0, %s96
      %s97 = sphi 0, %s94
      %s98 = sphi 0, %s97
      %s114 = sphi 0, %s98
      %s120 = sphi 0, %s122
      %s123 = sphi 0, %s120
      %s124 = sphi 0, %s123
      %s140 = sphi 0, %s124
      %s146 = sphi 0, %s148
      %s149 = sphi 0, %s146
      %s150 = sphi 0, %s149
      %s166 = sphi 0, %s150
      %s172 = sphi 0, %s174
      %s175 = sphi 0, %s172
      %s176 = sphi 0, %s175
      %s192 = sphi 0, %s176
      %s198 = sphi 0, %s200
      %s201 = sphi 0, %s198
      %s202 = sphi 0, %s201
      %s218 = sphi 0, %s202
      %s226 = sphi 0, %s228
      %s229 = sphi 0, %s226
      %s230 = sphi 0, %s229
      %s246 = sphi 0, %s230
    $region4: #{twin_critic_forward.1} parent=1 // loop_header_branch
      %23 = sbr.rel (%p21) target = $region8
    $region5: #{twin_critic_forward.1} parent=1 // loop_body
      %s25 = ssub.s32 %s20, 1
      %s26 = ssub.s32 %s20, 2
      %s33 = sadd.s32 1, %s28
      %p34 = scmp.ge.s32.totalorder %s33, 1
      %s35 = scalar_select %p34, 0, %s33
      %s36 = sadd.s32 1, %s27
      %s37 = scalar_select %p34, %s36, %s27
      %p38 = scmp.ge.s32.totalorder %s37, 2
      %s39 = scalar_select %p38, 0, %s37
      %s40 = ssub.s32 %s28, %s35
      %p41 = scmp.eq.s32.totalorder %s40, 0
      %s43 = sadd.s32 %s42, 1
      %s44 = scalar_select %p41, %s42, %s43
      %p47 = pneg %p41
      %p48 = scmp.eq.s32.totalorder %s20, 1
      %p49 = por %p47, %p48
      %p50 = scmp.ne.s32.totalorder %s42, %s45
      %p51 = scmp.eq.s32.totalorder %s20, 0
      %p52 = por %p50, %p51
      %p53 = scmp.ne.s32.totalorder %s42, %s45
      %p54 = scmp.eq.s32.totalorder %s25, 1
      %p55 = por %p53, %p54
      %p56 = scmp.ne.s32.totalorder %s45, %s46
      %p57 = scmp.eq.s32.totalorder %s25, 0
      %p58 = por %p56, %p57
      %p59 = scmp.ne.s32.totalorder %s45, %s46
      %p60 = scmp.eq.s32.totalorder %s26, 1
      %p61 = por %p59, %p60
      %p63 = scmp.ne.s32.totalorder %s46, %s62
      %p64 = scmp.eq.s32.totalorder %s26, 0
      %p65 = por %p63, %p64
      %s66 = ssub.s32 %s27, %s39
      %p67 = scmp.eq.s32.totalorder %s66, 0
      %s69 = sadd.s32 %s68, 1
      %s70 = scalar_select %p67, %s68, %s69
      %p73 = pneg %p67
      %p74 = scmp.eq.s32.totalorder %s20, 1
      %p75 = por %p73, %p74
      %p76 = scmp.ne.s32.totalorder %s68, %s71
      %p77 = scmp.eq.s32.totalorder %s20, 0
      %p78 = por %p76, %p77
      %p79 = scmp.ne.s32.totalorder %s68, %s71
      %p80 = scmp.eq.s32.totalorder %s25, 1
      %p81 = por %p79, %p80
      %p82 = scmp.ne.s32.totalorder %s71, %s72
      %p83 = scmp.eq.s32.totalorder %s25, 0
      %p84 = por %p82, %p83
      %p85 = scmp.ne.s32.totalorder %s71, %s72
      %p86 = scmp.eq.s32.totalorder %s26, 1
      %p87 = por %p85, %p86
      %p89 = scmp.ne.s32.totalorder %s72, %s88
      %p90 = scmp.eq.s32.totalorder %s26, 0
      %p91 = por %p89, %p90
      %s92 = ssub.s32 %s27, %s39
      %p93 = scmp.eq.s32.totalorder %s92, 0
      %s95 = sadd.s32 %s94, 1
      %s96 = scalar_select %p93, %s94, %s95
      %p99 = pneg %p93
      %p100 = scmp.eq.s32.totalorder %s20, 1
      %p101 = por %p99, %p100
      %p102 = scmp.ne.s32.totalorder %s94, %s97
      %p103 = scmp.eq.s32.totalorder %s20, 0
      %p104 = por %p102, %p103
      %p105 = scmp.ne.s32.totalorder %s94, %s97
      %p106 = scmp.eq.s32.totalorder %s25, 1
      %p107 = por %p105, %p106
      %p108 = scmp.ne.s32.totalorder %s97, %s98
      %p109 = scmp.eq.s32.totalorder %s25, 0
      %p110 = por %p108, %p109
      %p111 = scmp.ne.s32.totalorder %s97, %s98
      %p112 = scmp.eq.s32.totalorder %s26, 1
      %p113 = por %p111, %p112
      %p115 = scmp.ne.s32.totalorder %s98, %s114
      %p116 = scmp.eq.s32.totalorder %s26, 0
      %p117 = por %p115, %p116
      %s118 = ssub.s32 %s27, %s39
      %p119 = scmp.eq.s32.totalorder %s118, 0
      %s121 = sadd.s32 %s120, 1
      %s122 = scalar_select %p119, %s120, %s121
      %p125 = pneg %p119
      %p126 = scmp.eq.s32.totalorder %s20, 1
      %p127 = por %p125, %p126
      %p128 = scmp.ne.s32.totalorder %s120, %s123
      %p129 = scmp.eq.s32.totalorder %s20, 0
      %p130 = por %p128, %p129
      %p131 = scmp.ne.s32.totalorder %s120, %s123
      %p132 = scmp.eq.s32.totalorder %s25, 1
      %p133 = por %p131, %p132
      %p134 = scmp.ne.s32.totalorder %s123, %s124
      %p135 = scmp.eq.s32.totalorder %s25, 0
      %p136 = por %p134, %p135
      %p137 = scmp.ne.s32.totalorder %s123, %s124
      %p138 = scmp.eq.s32.totalorder %s26, 1
      %p139 = por %p137, %p138
      %p141 = scmp.ne.s32.totalorder %s124, %s140
      %p142 = scmp.eq.s32.totalorder %s26, 0
      %p143 = por %p141, %p142
      %s144 = ssub.s32 %s27, %s39
      %p145 = scmp.eq.s32.totalorder %s144, 0
      %s147 = sadd.s32 %s146, 1
      %s148 = scalar_select %p145, %s146, %s147
      %p151 = pneg %p145
      %p152 = scmp.eq.s32.totalorder %s20, 1
      %p153 = por %p151, %p152
      %p154 = scmp.ne.s32.totalorder %s146, %s149
      %p155 = scmp.eq.s32.totalorder %s20, 0
      %p156 = por %p154, %p155
      %p157 = scmp.ne.s32.totalorder %s146, %s149
      %p158 = scmp.eq.s32.totalorder %s25, 1
      %p159 = por %p157, %p158
      %p160 = scmp.ne.s32.totalorder %s149, %s150
      %p161 = scmp.eq.s32.totalorder %s25, 0
      %p162 = por %p160, %p161
      %p163 = scmp.ne.s32.totalorder %s149, %s150
      %p164 = scmp.eq.s32.totalorder %s26, 1
      %p165 = por %p163, %p164
      %p167 = scmp.ne.s32.totalorder %s150, %s166
      %p168 = scmp.eq.s32.totalorder %s26, 0
      %p169 = por %p167, %p168
      %s170 = ssub.s32 %s27, %s39
      %p171 = scmp.eq.s32.totalorder %s170, 0
      %s173 = sadd.s32 %s172, 1
      %s174 = scalar_select %p171, %s172, %s173
      %p177 = pneg %p171
      %p178 = scmp.eq.s32.totalorder %s20, 1
      %p179 = por %p177, %p178
      %p180 = scmp.ne.s32.totalorder %s172, %s175
      %p181 = scmp.eq.s32.totalorder %s20, 0
      %p182 = por %p180, %p181
      %p183 = scmp.ne.s32.totalorder %s172, %s175
      %p184 = scmp.eq.s32.totalorder %s25, 1
      %p185 = por %p183, %p184
      %p186 = scmp.ne.s32.totalorder %s175, %s176
      %p187 = scmp.eq.s32.totalorder %s25, 0
      %p188 = por %p186, %p187
      %p189 = scmp.ne.s32.totalorder %s175, %s176
      %p190 = scmp.eq.s32.totalorder %s26, 1
      %p191 = por %p189, %p190
      %p193 = scmp.ne.s32.totalorder %s176, %s192
      %p194 = scmp.eq.s32.totalorder %s26, 0
      %p195 = por %p193, %p194
      %s196 = ssub.s32 %s27, %s39
      %p197 = scmp.eq.s32.totalorder %s196, 0
      %s199 = sadd.s32 %s198, 1
      %s200 = scalar_select %p197, %s198, %s199
      %p203 = pneg %p197
      %p204 = scmp.eq.s32.totalorder %s20, 1
      %p205 = por %p203, %p204
      %p206 = scmp.ne.s32.totalorder %s198, %s201
      %p207 = scmp.eq.s32.totalorder %s20, 0
      %p208 = por %p206, %p207
      %p209 = scmp.ne.s32.totalorder %s198, %s201
      %p210 = scmp.eq.s32.totalorder %s25, 1
      %p211 = por %p209, %p210
      %p212 = scmp.ne.s32.totalorder %s201, %s202
      %p213 = scmp.eq.s32.totalorder %s25, 0
      %p214 = por %p212, %p213
      %p215 = scmp.ne.s32.totalorder %s201, %s202
      %p216 = scmp.eq.s32.totalorder %s26, 1
      %p217 = por %p215, %p216
      %p219 = scmp.ne.s32.totalorder %s202, %s218
      %p220 = scmp.eq.s32.totalorder %s26, 0
      %p221 = por %p219, %p220
      %s222 = ssub.s32 %s27, %s39
      %s223 = ssub.s32 %s28, %s35
      %s224 = sor.u32 %s222, %s223
      %p225 = scmp.eq.s32.totalorder %s224, 0
      %s227 = sadd.s32 %s226, 1
      %s228 = scalar_select %p225, %s226, %s227
      %p231 = pneg %p225
      %p232 = scmp.eq.s32.totalorder %s20, 1
      %p233 = por %p231, %p232
      %p234 = scmp.ne.s32.totalorder %s226, %s229
      %p235 = scmp.eq.s32.totalorder %s20, 0
      %p236 = por %p234, %p235
      %p237 = scmp.ne.s32.totalorder %s226, %s229
      %p238 = scmp.eq.s32.totalorder %s25, 1
      %p239 = por %p237, %p238
      %p240 = scmp.ne.s32.totalorder %s229, %s230
      %p241 = scmp.eq.s32.totalorder %s25, 0
      %p242 = por %p240, %p241
      %p243 = scmp.ne.s32.totalorder %s229, %s230
      %p244 = scmp.eq.s32.totalorder %s26, 1
      %p245 = por %p243, %p244
      %p247 = scmp.ne.s32.totalorder %s230, %s246
      %p248 = scmp.eq.s32.totalorder %s26, 0
      %p249 = por %p247, %p248
      %p250 = scmp.le.s32.totalorder 1, %s20
      %p251 = scmp.lt.s32.totalorder %s20, 3
      %p252 = pnand %p250, %p251
      %p253 = pneg %p252
      // Predicated region
      $region9: #{twin_critic_forward.1} parent=5 // pred_check
        _
      $region10: #{twin_critic_forward.1} parent=5 // pred_check_branch
        %255 = sbr.rel (%p252) target = $region12
      $region11: #{twin_critic_forward.1} parent=5 // pred_region
        %s256 = ssub.s32 %s20, 1
        // Predicated region
        $region13: #{twin_critic_forward.1} parent=11 // pred_check
          %p257 = pneg %p58
        $region14: #{twin_critic_forward.1} parent=11 // pred_check_branch
          %259 = sbr.rel (%p257) target = $region16
        $region15: #{twin_critic_forward.1} parent=11 // pred_region
          %s261 = ssub.s32 128, 128
          %262 = vsyncadd [#allocation3], %s261
          %s263 = smul.addr %s30, 128
          %s264 = scalar_lea.hbm %s0, %s263
          %s266 = sshll.u32 [#allocation2], 4
          %s267 = int_to_ptr.vmem [resolvable:$true] %s266
          %269 = dma.hbm_to_vmem [thread:$0]  %s264, 128, %s267, [#allocation3]
        $region16: #{twin_critic_forward.1} parent=11 // pred_fallthru
          _
      $region12: #{twin_critic_forward.1} parent=5 // pred_fallthru
        _
      %p270 = scmp.lt.s32.totalorder %s20, 2
      // Predicated region
      $region17: #{twin_critic_forward.1} parent=5 // pred_check
        %p271 = pneg %p270
      $region18: #{twin_critic_forward.1} parent=5 // pred_check_branch
        %273 = sbr.rel (%p271) target = $region20
      $region19: #{twin_critic_forward.1} parent=5 // pred_region
        // Predicated region
        $region21: #{twin_critic_forward.1} parent=19 // pred_check
          %p274 = pneg %p78
        $region22: #{twin_critic_forward.1} parent=19 // pred_check_branch
          %276 = sbr.rel (%p274) target = $region24
        $region23: #{twin_critic_forward.1} parent=19 // pred_region
          %s277 = sand.u32 %s20, 1
          %s278 = scalar_lea.sflag [#allocation5], %s277
          %s279 = sand.u32 %s68, 1
          %s280 = smul.addr %s279, 32
          %s281 = scalar_lea.vmem [#allocation4], %s280
          %s283 = ssub.s32 512, 512
          %284 = vsyncadd %s278, %s283
          %s285 = smul.addr %s27, 8
          %s286 = smul.addr %s285, 64
          %s287 = scalar_lea.hbm %s1, %s286
          %s288 = sshll.u32 %s281, 4
          %s289 = int_to_ptr.vmem [resolvable:$true] %s288
          %294 = dma.hbm_to_vmem [thread:$0]  %s287, 512, %s289, %s278, 256, 256, 16
        $region24: #{twin_critic_forward.1} parent=19 // pred_fallthru
          _
        // Predicated region
        $region25: #{twin_critic_forward.1} parent=19 // pred_check
          %p295 = pneg %p104
        $region26: #{twin_critic_forward.1} parent=19 // pred_check_branch
          %297 = sbr.rel (%p295) target = $region28
        $region27: #{twin_critic_forward.1} parent=19 // pred_region
          %s298 = sand.u32 %s20, 1
          %s299 = scalar_lea.sflag [#allocation5], %s298
          %s300 = sand.u32 %s94, 1
          %s301 = smul.addr %s300, 4
          %s302 = scalar_lea.vmem [#allocation6], %s301
          %s304 = ssub.s32 64, 64
          %305 = vsyncadd %s299, %s304
          %s306 = smul.addr %s27, 4
          %s307 = smul.addr %s306, 16
          %s308 = scalar_lea.hbm %s2, %s307
          %s310 = sshll.u32 %s302, 4
          %s311 = int_to_ptr.vmem [resolvable:$true] %s310
          %313 = dma.hbm_to_vmem [thread:$0]  %s308, 64, %s311, %s299
        $region28: #{twin_critic_forward.1} parent=19 // pred_fallthru
          _
        // Predicated region
        $region29: #{twin_critic_forward.1} parent=19 // pred_check
          %p314 = pneg %p130
        $region30: #{twin_critic_forward.1} parent=19 // pred_check_branch
          %316 = sbr.rel (%p314) target = $region32
        $region31: #{twin_critic_forward.1} parent=19 // pred_region
          %s317 = sand.u32 %s120, 1
          %s318 = scalar_lea.sflag [#allocation8], %s317
          %s319 = sand.u32 %s120, 1
          %s320 = smul.addr %s319, 600
          %s321 = scalar_lea.vmem [#allocation7], %s320
          %s323 = ssub.s32 9600, 9600
          %324 = vsyncadd %s318, %s323
          %s325 = smul.addr %s27, 150
          %s326 = smul.addr %s325, 64
          %s327 = scalar_lea.hbm %s3, %s326
          %s328 = sshll.u32 %s321, 4
          %s329 = int_to_ptr.vmem [resolvable:$true] %s328
          %334 = dma.hbm_to_vmem [thread:$0]  %s327, 9600, %s329, %s318, 192, 192, 12
        $region32: #{twin_critic_forward.1} parent=19 // pred_fallthru
          _
        // Predicated region
        $region33: #{twin_critic_forward.1} parent=19 // pred_check
          %p335 = pneg %p156
        $region34: #{twin_critic_forward.1} parent=19 // pred_check_branch
          %337 = sbr.rel (%p335) target = $region36
        $region35: #{twin_critic_forward.1} parent=19 // pred_region
          %p338 = scmp.lt.s32.totalorder %s27, 1
          %s339 = scalar_select %p338, %s27, 1
          %s340 = smul.addr %s339, 3
          %s341 = scalar_lea.vmem %s4, %s340
        $region36: #{twin_critic_forward.1} parent=19 // pred_fallthru
          _
        // Predicated region
        $region37: #{twin_critic_forward.1} parent=19 // pred_check
          %p342 = pneg %p182
        $region38: #{twin_critic_forward.1} parent=19 // pred_check_branch
          %344 = sbr.rel (%p342) target = $region40
        $region39: #{twin_critic_forward.1} parent=19 // pred_region
          %p345 = scmp.lt.s32.totalorder %s27, 1
          %s346 = scalar_select %p345, %s27, 1
          %s347 = smul.addr %s346, 3
          %s348 = scalar_lea.vmem %s5, %s347
        $region40: #{twin_critic_forward.1} parent=19 // pred_fallthru
          _
        // Predicated region
        $region41: #{twin_critic_forward.1} parent=19 // pred_check
          %p349 = pneg %p208
        $region42: #{twin_critic_forward.1} parent=19 // pred_check_branch
          %351 = sbr.rel (%p349) target = $region44
        $region43: #{twin_critic_forward.1} parent=19 // pred_region
          %p352 = scmp.lt.s32.totalorder %s27, 1
          %s353 = scalar_select %p352, %s27, 1
          %s354 = scalar_lea.vmem %s6, %s353
        $region44: #{twin_critic_forward.1} parent=19 // pred_fallthru
          _
      $region20: #{twin_critic_forward.1} parent=5 // pred_fallthru
        _
      %p355 = scmp.le.s32.totalorder 1, %s20
      %p356 = scmp.lt.s32.totalorder %s20, 3
      %p357 = pnand %p355, %p356
      %p358 = pneg %p357
      // Predicated region
      $region45: #{twin_critic_forward.1} parent=5 // pred_check
        _
      $region46: #{twin_critic_forward.1} parent=5 // pred_check_branch
        %360 = sbr.rel (%p357) target = $region48
      $region47: #{twin_critic_forward.1} parent=5 // pred_region
        %s361 = ssub.s32 %s20, 1
        // Predicated region
        $region49: #{twin_critic_forward.1} parent=47 // pred_check
          %p362 = pneg %p58
        $region50: #{twin_critic_forward.1} parent=47 // pred_check_branch
          %364 = sbr.rel (%p362) target = $region52
        $region51: #{twin_critic_forward.1} parent=47 // pred_region
          %365 = dma.done [#allocation3], 128
        $region52: #{twin_critic_forward.1} parent=47 // pred_fallthru
          _
        %s366 = sand.u32 %s25, 1
        %s367 = scalar_lea.sflag [#allocation5], %s366
        %s368 = sand.u32 %s71, 1
        %s369 = smul.addr %s368, 32
        %s370 = scalar_lea.vmem [#allocation4], %s369
        // Predicated region
        $region53: #{twin_critic_forward.1} parent=47 // pred_check
          %p371 = pneg %p84
        $region54: #{twin_critic_forward.1} parent=47 // pred_check_branch
          %373 = sbr.rel (%p371) target = $region56
        $region55: #{twin_critic_forward.1} parent=47 // pred_region
          %374 = dma.done %s367, 512
        $region56: #{twin_critic_forward.1} parent=47 // pred_fallthru
          _
        %s375 = sand.u32 %s25, 1
        %s376 = scalar_lea.sflag [#allocation5], %s375
        %s377 = sand.u32 %s97, 1
        %s378 = smul.addr %s377, 4
        %s379 = scalar_lea.vmem [#allocation6], %s378
        // Predicated region
        $region57: #{twin_critic_forward.1} parent=47 // pred_check
          %p380 = pneg %p110
        $region58: #{twin_critic_forward.1} parent=47 // pred_check_branch
          %382 = sbr.rel (%p380) target = $region60
        $region59: #{twin_critic_forward.1} parent=47 // pred_region
          %383 = dma.done %s376, 64
        $region60: #{twin_critic_forward.1} parent=47 // pred_fallthru
          _
        %s384 = sand.u32 %s123, 1
        %s385 = scalar_lea.sflag [#allocation8], %s384
        %s386 = sand.u32 %s123, 1
        %s387 = smul.addr %s386, 600
        %s388 = scalar_lea.vmem [#allocation7], %s387
        // Predicated region
        $region61: #{twin_critic_forward.1} parent=47 // pred_check
          %p389 = pneg %p136
        $region62: #{twin_critic_forward.1} parent=47 // pred_check_branch
          %391 = sbr.rel (%p389) target = $region64
        $region63: #{twin_critic_forward.1} parent=47 // pred_region
          %392 = dma.done %s385, 9600
        $region64: #{twin_critic_forward.1} parent=47 // pred_fallthru
          _
        %p393 = pneg %p58
        %p394 = pneg %p55
        %s395 = sand.u32 %s25, 1
        %s396 = scalar_lea.sflag [#allocation5], %s395
        %s397 = sand.u32 %s71, 1
        %s398 = smul.addr %s397, 32
        %s399 = scalar_lea.vmem [#allocation4], %s398
        %p400 = pneg %p84
        %p401 = pneg %p81
        %s402 = sand.u32 %s25, 1
        %s403 = scalar_lea.sflag [#allocation5], %s402
        %s404 = sand.u32 %s97, 1
        %s405 = smul.addr %s404, 4
        %s406 = scalar_lea.vmem [#allocation6], %s405
        %p407 = pneg %p110
        %p408 = pneg %p107
        %s409 = sand.u32 %s123, 1
        %s410 = scalar_lea.sflag [#allocation8], %s409
        %s411 = sand.u32 %s123, 1
        %s412 = smul.addr %s411, 600
        %s413 = scalar_lea.vmem [#allocation7], %s412
        %p414 = pneg %p136
        %p415 = pneg %p133
        %p416 = scmp.lt.s32.totalorder %s29, 1
        %s417 = scalar_select %p416, %s29, 1
        %s418 = smul.addr %s417, 3
        %s419 = scalar_lea.vmem %s4, %s418
        %p420 = pneg %p162
        %p421 = pneg %p159
        %p422 = scmp.lt.s32.totalorder %s29, 1
        %s423 = scalar_select %p422, %s29, 1
        %s424 = smul.addr %s423, 3
        %s425 = scalar_lea.vmem %s5, %s424
        %p426 = pneg %p188
        %p427 = pneg %p185
        %p428 = scmp.lt.s32.totalorder %s29, 1
        %s429 = scalar_select %p428, %s29, 1
        %s430 = scalar_lea.vmem %s6, %s429
        %p431 = pneg %p214
        %p432 = pneg %p211
        %p433 = pneg %p242
        %p434 = pneg %p239
        %p435 = scmp.lt.s32.totalorder %s29, 1
        %s436 = scalar_select %p435, %s29, 1
        %p437 = scmp.lt.s32.totalorder %s30, 0
        %s438 = scalar_select %p437, %s30, 0
        %s439 = sadd.s32 %s438, %s436
        %s440 = smul.addr %s439, 8
        %s441 = scalar_lea.vmem %s7, %s440
        %p442 = scmp.lt.s32.totalorder %s29, 1
        %s443 = scalar_select %p442, %s29, 1
        %s444 = smul.addr %s443, 3
        %s445 = scalar_lea.vmem %s4, %s444
        %p446 = scmp.lt.s32.totalorder %s29, 1
        %s447 = scalar_select %p446, %s29, 1
        %s448 = smul.addr %s447, 3
        %s449 = scalar_lea.vmem %s5, %s448
        %p450 = scmp.lt.s32.totalorder %s29, 1
        %s451 = scalar_select %p450, %s29, 1
        %s452 = scalar_lea.vmem %s6, %s451
        %p453 = scmp.lt.s32.totalorder %s29, 1
        %s454 = scalar_select %p453, %s29, 1
        %p455 = scmp.lt.s32.totalorder %s30, 0
        %s456 = scalar_select %p455, %s30, 0
        %s457 = sadd.s32 %s456, %s454
        %s458 = smul.addr %s457, 8
        %s459 = scalar_lea.vmem %s7, %s458
        %v461 = vld [vmem:[#allocation2] sm:$0xff]
        %v462 = vpack.c.bf16 %v461, %v461
        %v463 = vld [vmem:[%s370] sm:$0xff]
        %v464 = vld [vmem:[%s370 + $0x8] sm:$0xff]
        %v465 = vld [vmem:[%s370 + $0x10] sm:$0xff]
        %v466 = vld [vmem:[%s370 + $0x18] sm:$0xff]
        %v467 = vld [vmem:[%s379] sm:$0xf]
        %v469 = vlaneseq
        %v470 = vshrl.u32 %v469, 7
        %v471 = vsub.s32 0, %v470
        %v472 = vrot.slane %v467, %v471
        %v473 = vlaneseq
        %v474 = vshrl.u32 %v473, 7
        %v475 = vsub.s32 1, %v474
        %v476 = vrot.slane %v467, %v475
        %v477 = vlaneseq
        %v478 = vshrl.u32 %v477, 7
        %v479 = vsub.s32 2, %v478
        %v480 = vrot.slane %v467, %v479
        %v481 = vlaneseq
        %v482 = vshrl.u32 %v481, 7
        %v483 = vsub.s32 3, %v482
        %v484 = vrot.slane %v467, %v483
        %v493 = vunpack.c.l.b16 %v463
        %v494 = vunpack.c.h.b16 %v463
        %v495 = vunpack.c.l.b16 %v464
        %v496 = vunpack.c.h.b16 %v464
        %v497 = vunpack.c.l.b16 %v465
        %v498 = vunpack.c.h.b16 %v465
        %v499 = vunpack.c.l.b16 %v466
        %v500 = vunpack.c.h.b16 %v466
        %v501 = vpack.c.b16 %v497, %v493
        %v502 = vpack.c.b16 %v498, %v494
        %v503 = vpack.c.b16 %v499, %v495
        %v504 = vpack.c.b16 %v500, %v496
        %vm509 = vcmask 130048
        %v511 = vsel %vm509, %v462, 0
        %513 = vmatprep.subr.bf16.mxu0 %v502
        %514 = vmatpush1.bf16.msra.mxu0 %v501
        %515 = vmatprep.subr.bf16.mxu0 0
        %516 = vmatpush1.bf16.msra.mxu0 0
        %517 = vmatprep.subr.bf16.mxu0 0
        %518 = vmatpush1.bf16.msra.mxu0 0
        %519 = vmatprep.subr.bf16.mxu0 0
        %520 = vmatpush1.bf16.msra.mxu0 0
        %521 = vmatprep.subr.bf16.mxu0 0
        %522 = vmatpush1.bf16.msra.mxu0 0
        %523 = vmatprep.subr.bf16.mxu0 0
        %524 = vmatpush1.bf16.msra.mxu0 0
        %525 = vmatprep.subr.bf16.mxu0 0
        %526 = vmatpush1.bf16.msra.mxu0 0
        %527 = vmatprep.subr.bf16.mxu0 0
        %528 = vmatpush1.bf16.msra.mxu0 0
        %529 = vmatprep.subr.bf16.mxu0 0
        %530 = vmatpush1.bf16.msra.mxu0 0
        %531 = vmatprep.subr.bf16.mxu0 0
        %532 = vmatpush1.bf16.msra.mxu0 0
        %533 = vmatprep.subr.bf16.mxu0 0
        %534 = vmatpush1.bf16.msra.mxu0 0
        %535 = vmatprep.subr.bf16.mxu0 0
        %536 = vmatpush1.bf16.msra.mxu0 0
        %537 = vmatprep.subr.bf16.mxu0 0
        %538 = vmatpush1.bf16.msra.mxu0 0
        %539 = vmatprep.subr.bf16.mxu0 0
        %540 = vmatpush1.bf16.msra.mxu0 0
        %541 = vmatprep.subr.bf16.mxu0 0
        %542 = vmatpush1.bf16.msra.mxu0 0
        %543 = vmatprep.subr.bf16.mxu0 0
        %544 = vmatpush1.bf16.msra.mxu0 0
        %545 = vmatprep.mubr.bf16.mxu0 0
        %546 = vmatmul.mubr.bf16.gmra.mrb[0].mxu0 %v511
        %v547 = vpop.f32.mrb[0].mxu0
        %v548 = vadd.f32 %v472, %v547
        %v549 = vpop.f32.mrb[0].mxu0
        %v550 = vadd.f32 %v476, %v549
        %v551 = vpop.f32.mrb[0].mxu0
        %v552 = vpop.f32.mrb[0].mxu0
        %553 = vdwg.mxu0
        %554 = vmatprep.subr.bf16.mxu0 %v504
        %555 = vmatpush1.bf16.msra.mxu0 %v503
        %556 = vmatprep.subr.bf16.mxu0 0
        %557 = vmatpush1.bf16.msra.mxu0 0
        %558 = vmatprep.subr.bf16.mxu0 0
        %559 = vmatpush1.bf16.msra.mxu0 0
        %560 = vmatprep.subr.bf16.mxu0 0
        %561 = vmatpush1.bf16.msra.mxu0 0
        %562 = vmatprep.subr.bf16.mxu0 0
        %563 = vmatpush1.bf16.msra.mxu0 0
        %564 = vmatprep.subr.bf16.mxu0 0
        %565 = vmatpush1.bf16.msra.mxu0 0
        %566 = vmatprep.subr.bf16.mxu0 0
        %567 = vmatpush1.bf16.msra.mxu0 0
        %568 = vmatprep.subr.bf16.mxu0 0
        %569 = vmatpush1.bf16.msra.mxu0 0
        %570 = vmatprep.subr.bf16.mxu0 0
        %571 = vmatpush1.bf16.msra.mxu0 0
        %572 = vmatprep.subr.bf16.mxu0 0
        %573 = vmatpush1.bf16.msra.mxu0 0
        %574 = vmatprep.subr.bf16.mxu0 0
        %575 = vmatpush1.bf16.msra.mxu0 0
        %576 = vmatprep.subr.bf16.mxu0 0
        %577 = vmatpush1.bf16.msra.mxu0 0
        %578 = vmatprep.subr.bf16.mxu0 0
        %579 = vmatpush1.bf16.msra.mxu0 0
        %580 = vmatprep.subr.bf16.mxu0 0
        %581 = vmatpush1.bf16.msra.mxu0 0
        %582 = vmatprep.subr.bf16.mxu0 0
        %583 = vmatpush1.bf16.msra.mxu0 0
        %584 = vmatprep.subr.bf16.mxu0 0
        %585 = vmatpush1.bf16.msra.mxu0 0
        %586 = vmatprep.mubr.bf16.mxu0 0
        %587 = vmatmul.mubr.bf16.gmra.mrb[0].mxu0 %v511
        %v588 = vpop.f32.mrb[0].mxu0
        %v589 = vadd.f32 %v480, %v588
        %v590 = vpop.f32.mrb[0].mxu0
        %v591 = vadd.f32 %v484, %v590
        %v592 = vpop.f32.mrb[0].mxu0
        %v593 = vpop.f32.mrb[0].mxu0
        %594 = vdwg.mxu0
        %v595 = vmax.f32 %v548, 0.0
        %v596 = vmax.f32 %v550, 0.0
        %v597 = vmax.f32 %v589, 0.0
        %v598 = vmax.f32 %v591, 0.0
        %v599 = vpack.c.bf16 %v595, %v595
        %v600 = vpack.c.bf16 %v596, %v596
        %v601 = vpack.c.bf16 %v597, %v597
        %v602 = vpack.c.bf16 %v598, %v598
        %v603 = vld [vmem:[%s388] sm:$0xff]
        %v604 = vld [vmem:[%s388 + $0x8] sm:$0xf]
        %v605 = vld [vmem:[%s388 + $0xc] sm:$0xff]
        %v606 = vld [vmem:[%s388 + $0x14] sm:$0xf]
        %v607 = vld [vmem:[%s388 + $0x18] sm:$0xff]
        %v608 = vld [vmem:[%s388 + $0x20] sm:$0xf]
        %v609 = vld [vmem:[%s388 + $0x24] sm:$0xff]
        %v610 = vld [vmem:[%s388 + $0x2c] sm:$0xf]
        %v611 = vld [vmem:[%s388 + $0x30] sm:$0xff]
        %v612 = vld [vmem:[%s388 + $0x38] sm:$0xf]
        %v613 = vld [vmem:[%s388 + $0x3c] sm:$0xff]
        %v614 = vld [vmem:[%s388 + $0x44] sm:$0xf]
        %v615 = vld [vmem:[%s388 + $0x48] sm:$0xff]
        %v616 = vld [vmem:[%s388 + $0x50] sm:$0xf]
        %v617 = vld [vmem:[%s388 + $0x54] sm:$0xff]
        %v618 = vld [vmem:[%s388 + $0x5c] sm:$0xf]
        %v619 = vld [vmem:[%s388 + $0x60] sm:$0xff]
        %v620 = vld [vmem:[%s388 + $0x68] sm:$0xf]
        %v621 = vld [vmem:[%s388 + $0x6c] sm:$0xff]
        %v622 = vld [vmem:[%s388 + $0x74] sm:$0xf]
        %v623 = vld [vmem:[%s388 + $0x78] sm:$0xff]
        %v624 = vld [vmem:[%s388 + $0x80] sm:$0xf]
        %v625 = vld [vmem:[%s388 + $0x84] sm:$0xff]
        %v626 = vld [vmem:[%s388 + $0x8c] sm:$0xf]
        %v627 = vld [vmem:[%s388 + $0x90] sm:$0xff]
        %v628 = vld [vmem:[%s388 + $0x98] sm:$0xf]
        %v629 = vld [vmem:[%s388 + $0x9c] sm:$0xff]
        %v630 = vld [vmem:[%s388 + $0xa4] sm:$0xf]
        %v631 = vld [vmem:[%s388 + $0xa8] sm:$0xff]
        %v632 = vld [vmem:[%s388 + $0xb0] sm:$0xf]
        %v633 = vld [vmem:[%s388 + $0xb4] sm:$0xff]
        %v634 = vld [vmem:[%s388 + $0xbc] sm:$0xf]
        %v635 = vld [vmem:[%s388 + $0xc0] sm:$0xff]
        %v636 = vld [vmem:[%s388 + $0xc8] sm:$0xf]
        %v637 = vld [vmem:[%s388 + $0xcc] sm:$0xff]
        %v638 = vld [vmem:[%s388 + $0xd4] sm:$0xf]
        %v639 = vld [vmem:[%s388 + $0xd8] sm:$0xff]
        %v640 = vld [vmem:[%s388 + $0xe0] sm:$0xf]
        %v641 = vld [vmem:[%s388 + $0xe4] sm:$0xff]
        %v642 = vld [vmem:[%s388 + $0xec] sm:$0xf]
        %v643 = vld [vmem:[%s388 + $0xf0] sm:$0xff]
        %v644 = vld [vmem:[%s388 + $0xf8] sm:$0xf]
        %v645 = vld [vmem:[%s388 + $0xfc] sm:$0xff]
        %v646 = vld [vmem:[%s388 + $0x104] sm:$0xf]
        %v647 = vld [vmem:[%s388 + $0x108] sm:$0xff]
        %v648 = vld [vmem:[%s388 + $0x110] sm:$0xf]
        %v649 = vld [vmem:[%s388 + $0x114] sm:$0xff]
        %v650 = vld [vmem:[%s388 + $0x11c] sm:$0xf]
        %v651 = vld [vmem:[%s388 + $0x120] sm:$0xff]
        %v652 = vld [vmem:[%s388 + $0x128] sm:$0xf]
        %v653 = vld [vmem:[%s388 + $0x12c] sm:$0xff]
        %v654 = vld [vmem:[%s388 + $0x134] sm:$0xf]
        %v655 = vld [vmem:[%s388 + $0x138] sm:$0xff]
        %v656 = vld [vmem:[%s388 + $0x140] sm:$0xf]
        %v657 = vld [vmem:[%s388 + $0x144] sm:$0xff]
        %v658 = vld [vmem:[%s388 + $0x14c] sm:$0xf]
        %v659 = vld [vmem:[%s388 + $0x150] sm:$0xff]
        %v660 = vld [vmem:[%s388 + $0x158] sm:$0xf]
        %v661 = vld [vmem:[%s388 + $0x15c] sm:$0xff]
        %v662 = vld [vmem:[%s388 + $0x164] sm:$0xf]
        %v663 = vld [vmem:[%s388 + $0x168] sm:$0xff]
        %v664 = vld [vmem:[%s388 + $0x170] sm:$0xf]
        %v665 = vld [vmem:[%s388 + $0x174] sm:$0xff]
        %v666 = vld [vmem:[%s388 + $0x17c] sm:$0xf]
        %v667 = vld [vmem:[%s388 + $0x180] sm:$0xff]
        %v668 = vld [vmem:[%s388 + $0x188] sm:$0xf]
        %v669 = vld [vmem:[%s388 + $0x18c] sm:$0xff]
        %v670 = vld [vmem:[%s388 + $0x194] sm:$0xf]
        %v671 = vld [vmem:[%s388 + $0x198] sm:$0xff]
        %v672 = vld [vmem:[%s388 + $0x1a0] sm:$0xf]
        %v673 = vld [vmem:[%s388 + $0x1a4] sm:$0xff]
        %v674 = vld [vmem:[%s388 + $0x1ac] sm:$0xf]
        %v675 = vld [vmem:[%s388 + $0x1b0] sm:$0xff]
        %v676 = vld [vmem:[%s388 + $0x1b8] sm:$0xf]
        %v677 = vld [vmem:[%s388 + $0x1bc] sm:$0xff]
        %v678 = vld [vmem:[%s388 + $0x1c4] sm:$0xf]
        %v679 = vld [vmem:[%s388 + $0x1c8] sm:$0xff]
        %v680 = vld [vmem:[%s388 + $0x1d0] sm:$0xf]
        %v681 = vld [vmem:[%s388 + $0x1d4] sm:$0xff]
        %v682 = vld [vmem:[%s388 + $0x1dc] sm:$0xf]
        %v683 = vld [vmem:[%s388 + $0x1e0] sm:$0xff]
        %v684 = vld [vmem:[%s388 + $0x1e8] sm:$0xf]
        %v685 = vld [vmem:[%s388 + $0x1ec] sm:$0xff]
        %v686 = vld [vmem:[%s388 + $0x1f4] sm:$0xf]
        %v687 = vld [vmem:[%s388 + $0x1f8] sm:$0xff]
        %v688 = vld [vmem:[%s388 + $0x200] sm:$0xf]
        %v689 = vld [vmem:[%s388 + $0x204] sm:$0xff]
        %v690 = vld [vmem:[%s388 + $0x20c] sm:$0xf]
        %v691 = vld [vmem:[%s388 + $0x210] sm:$0xff]
        %v692 = vld [vmem:[%s388 + $0x218] sm:$0xf]
        %v693 = vld [vmem:[%s388 + $0x21c] sm:$0xff]
        %v694 = vld [vmem:[%s388 + $0x224] sm:$0xf]
        %v695 = vld [vmem:[%s388 + $0x228] sm:$0xff]
        %v696 = vld [vmem:[%s388 + $0x230] sm:$0xf]
        %v697 = vld [vmem:[%s388 + $0x234] sm:$0xff]
        %v698 = vld [vmem:[%s388 + $0x23c] sm:$0xf]
        %v699 = vld [vmem:[%s388 + $0x240] sm:$0xff]
        %v700 = vld [vmem:[%s388 + $0x248] sm:$0xf]
        %v701 = vld [vmem:[%s388 + $0x24c] sm:$0xff]
        %v702 = vld [vmem:[%s388 + $0x254] sm:$0xf]
        %v703 = vld [vmem:[%s445] sm:$0x7]
        %v705 = vlaneseq
        %v706 = vshrl.u32 %v705, 7
        %v707 = vsub.s32 0, %v706
        %v708 = vrot.slane %v703, %v707
        %v709 = vlaneseq
        %v710 = vshrl.u32 %v709, 7
        %v711 = vsub.s32 1, %v710
        %v712 = vrot.slane %v703, %v711
        %v713 = vlaneseq
        %v714 = vshrl.u32 %v713, 7
        %v715 = vsub.s32 2, %v714
        %v716 = vrot.slane %v703, %v715
        %v820 = vunpack.c.l.b16 %v603
        %v821 = vunpack.c.h.b16 %v603
        %v822 = vunpack.c.l.b16 %v604
        %v823 = vunpack.c.l.b16 %v605
        %v824 = vunpack.c.h.b16 %v605
        %v825 = vunpack.c.l.b16 %v606
        %v826 = vunpack.c.l.b16 %v607
        %v827 = vunpack.c.h.b16 %v607
        %v828 = vunpack.c.l.b16 %v608
        %v829 = vunpack.c.l.b16 %v609
        %v830 = vunpack.c.h.b16 %v609
        %v831 = vunpack.c.l.b16 %v610
        %v832 = vunpack.c.l.b16 %v611
        %v833 = vunpack.c.h.b16 %v611
        %v834 = vunpack.c.l.b16 %v612
        %v835 = vunpack.c.l.b16 %v613
        %v836 = vunpack.c.h.b16 %v613
        %v837 = vunpack.c.l.b16 %v614
        %v838 = vunpack.c.l.b16 %v615
        %v839 = vunpack.c.h.b16 %v615
        %v840 = vunpack.c.l.b16 %v616
        %v841 = vunpack.c.l.b16 %v617
        %v842 = vunpack.c.h.b16 %v617
        %v843 = vunpack.c.l.b16 %v618
        %v844 = vunpack.c.l.b16 %v619
        %v845 = vunpack.c.h.b16 %v619
        %v846 = vunpack.c.l.b16 %v620
        %v847 = vunpack.c.l.b16 %v621
        %v848 = vunpack.c.h.b16 %v621
        %v849 = vunpack.c.l.b16 %v622
        %v850 = vunpack.c.l.b16 %v623
        %v851 = vunpack.c.h.b16 %v623
        %v852 = vunpack.c.l.b16 %v624
        %v853 = vunpack.c.l.b16 %v625
        %v854 = vunpack.c.h.b16 %v625
        %v855 = vunpack.c.l.b16 %v626
        %v856 = vunpack.c.l.b16 %v627
        %v857 = vunpack.c.h.b16 %v627
        %v858 = vunpack.c.l.b16 %v628
        %v859 = vunpack.c.l.b16 %v629
        %v860 = vunpack.c.h.b16 %v629
        %v861 = vunpack.c.l.b16 %v630
        %v862 = vunpack.c.l.b16 %v631
        %v863 = vunpack.c.h.b16 %v631
        %v864 = vunpack.c.l.b16 %v632
        %v865 = vunpack.c.l.b16 %v633
        %v866 = vunpack.c.h.b16 %v633
        %v867 = vunpack.c.l.b16 %v634
        %v868 = vunpack.c.l.b16 %v635
        %v869 = vunpack.c.h.b16 %v635
        %v870 = vunpack.c.l.b16 %v636
        %v871 = vunpack.c.l.b16 %v637
        %v872 = vunpack.c.h.b16 %v637
        %v873 = vunpack.c.l.b16 %v638
        %v874 = vunpack.c.l.b16 %v639
        %v875 = vunpack.c.h.b16 %v639
        %v876 = vunpack.c.l.b16 %v640
        %v877 = vunpack.c.l.b16 %v641
        %v878 = vunpack.c.h.b16 %v641
        %v879 = vunpack.c.l.b16 %v642
        %v880 = vunpack.c.l.b16 %v643
        %v881 = vunpack.c.h.b16 %v643
        %v882 = vunpack.c.l.b16 %v644
        %v883 = vunpack.c.l.b16 %v645
        %v884 = vunpack.c.h.b16 %v645
        %v885 = vunpack.c.l.b16 %v646
        %v886 = vunpack.c.l.b16 %v647
        %v887 = vunpack.c.h.b16 %v647
        %v888 = vunpack.c.l.b16 %v648
        %v889 = vunpack.c.l.b16 %v649
        %v890 = vunpack.c.h.b16 %v649
        %v891 = vunpack.c.l.b16 %v650
        %v892 = vunpack.c.l.b16 %v651
        %v893 = vunpack.c.h.b16 %v651
        %v894 = vunpack.c.l.b16 %v652
        %v895 = vunpack.c.l.b16 %v653
        %v896 = vunpack.c.h.b16 %v653
        %v897 = vunpack.c.l.b16 %v654
        %v898 = vunpack.c.l.b16 %v655
        %v899 = vunpack.c.h.b16 %v655
        %v900 = vunpack.c.l.b16 %v656
        %v901 = vunpack.c.l.b16 %v657
        %v902 = vunpack.c.h.b16 %v657
        %v903 = vunpack.c.l.b16 %v658
        %v904 = vunpack.c.l.b16 %v659
        %v905 = vunpack.c.h.b16 %v659
        %v906 = vunpack.c.l.b16 %v660
        %v907 = vunpack.c.l.b16 %v661
        %v908 = vunpack.c.h.b16 %v661
        %v909 = vunpack.c.l.b16 %v662
        %v910 = vunpack.c.l.b16 %v663
        %v911 = vunpack.c.h.b16 %v663
        %v912 = vunpack.c.l.b16 %v664
        %v913 = vunpack.c.l.b16 %v665
        %v914 = vunpack.c.h.b16 %v665
        %v915 = vunpack.c.l.b16 %v666
        %v916 = vunpack.c.l.b16 %v667
        %v917 = vunpack.c.h.b16 %v667
        %v918 = vunpack.c.l.b16 %v668
        %v919 = vunpack.c.l.b16 %v669
        %v920 = vunpack.c.h.b16 %v669
        %v921 = vunpack.c.l.b16 %v670
        %v922 = vunpack.c.l.b16 %v671
        %v923 = vunpack.c.h.b16 %v671
        %v924 = vunpack.c.l.b16 %v672
        %v925 = vunpack.c.l.b16 %v673
        %v926 = vunpack.c.h.b16 %v673
        %v927 = vunpack.c.l.b16 %v674
        %v928 = vunpack.c.l.b16 %v675
        %v929 = vunpack.c.h.b16 %v675
        %v930 = vunpack.c.l.b16 %v676
        %v931 = vunpack.c.l.b16 %v677
        %v932 = vunpack.c.h.b16 %v677
        %v933 = vunpack.c.l.b16 %v678
        %v934 = vunpack.c.l.b16 %v679
        %v935 = vunpack.c.h.b16 %v679
        %v936 = vunpack.c.l.b16 %v680
        %v937 = vunpack.c.l.b16 %v681
        %v938 = vunpack.c.h.b16 %v681
        %v939 = vunpack.c.l.b16 %v682
        %v940 = vunpack.c.l.b16 %v683
        %v941 = vunpack.c.h.b16 %v683
        %v942 = vunpack.c.l.b16 %v684
        %v943 = vunpack.c.l.b16 %v685
        %v944 = vunpack.c.h.b16 %v685
        %v945 = vunpack.c.l.b16 %v686
        %v946 = vunpack.c.l.b16 %v687
        %v947 = vunpack.c.h.b16 %v687
        %v948 = vunpack.c.l.b16 %v688
        %v949 = vunpack.c.l.b16 %v689
        %v950 = vunpack.c.h.b16 %v689
        %v951 = vunpack.c.l.b16 %v690
        %v952 = vunpack.c.l.b16 %v691
        %v953 = vunpack.c.h.b16 %v691
        %v954 = vunpack.c.l.b16 %v692
        %v955 = vunpack.c.l.b16 %v693
        %v956 = vunpack.c.h.b16 %v693
        %v957 = vunpack.c.l.b16 %v694
        %v958 = vunpack.c.l.b16 %v695
        %v959 = vunpack.c.h.b16 %v695
        %v960 = vunpack.c.l.b16 %v696
        %v961 = vunpack.c.l.b16 %v697
        %v962 = vunpack.c.h.b16 %v697
        %v963 = vunpack.c.l.b16 %v698
        %v964 = vunpack.c.l.b16 %v699
        %v965 = vunpack.c.h.b16 %v699
        %v966 = vunpack.c.l.b16 %v700
        %v967 = vunpack.c.l.b16 %v701
        %v968 = vunpack.c.h.b16 %v701
        %v969 = vunpack.c.l.b16 %v702
        %v970 = vpack.c.b16 %v823, %v820
        %v971 = vpack.c.b16 %v824, %v821
        %v972 = vpack.c.b16 %v825, %v822
        %v973 = vpack.c.b16 %v829, %v826
        %v974 = vpack.c.b16 %v830, %v827
        %v975 = vpack.c.b16 %v831, %v828
        %v976 = vpack.c.b16 %v835, %v832
        %v977 = vpack.c.b16 %v836, %v833
        %v978 = vpack.c.b16 %v837, %v834
        %v979 = vpack.c.b16 %v841, %v838
        %v980 = vpack.c.b16 %v842, %v839
        %v981 = vpack.c.b16 %v843, %v840
        %v982 = vpack.c.b16 %v847, %v844
        %v983 = vpack.c.b16 %v848, %v845
        %v984 = vpack.c.b16 %v849, %v846
        %v985 = vpack.c.b16 %v853, %v850
        %v986 = vpack.c.b16 %v854, %v851
        %v987 = vpack.c.b16 %v855, %v852
        %v988 = vpack.c.b16 %v859, %v856
        %v989 = vpack.c.b16 %v860, %v857
        %v990 = vpack.c.b16 %v861, %v858
        %v991 = vpack.c.b16 %v865, %v862
        %v992 = vpack.c.b16 %v866, %v863
        %v993 = vpack.c.b16 %v867, %v864
        %v994 = vpack.c.b16 %v871, %v868
        %v995 = vpack.c.b16 %v872, %v869
        %v996 = vpack.c.b16 %v873, %v870
        %v997 = vpack.c.b16 %v877, %v874
        %v998 = vpack.c.b16 %v878, %v875
        %v999 = vpack.c.b16 %v879, %v876
        %v1000 = vpack.c.b16 %v883, %v880
        %v1001 = vpack.c.b16 %v884, %v881
        %v1002 = vpack.c.b16 %v885, %v882
        %v1003 = vpack.c.b16 %v889, %v886
        %v1004 = vpack.c.b16 %v890, %v887
        %v1005 = vpack.c.b16 %v891, %v888
        %v1006 = vpack.c.b16 %v895, %v892
        %v1007 = vpack.c.b16 %v896, %v893
        %v1008 = vpack.c.b16 %v897, %v894
        %v1009 = vpack.c.b16 %v901, %v898
        %v1010 = vpack.c.b16 %v902, %v899
        %v1011 = vpack.c.b16 %v903, %v900
        %v1012 = vpack.c.b16 %v907, %v904
        %v1013 = vpack.c.b16 %v908, %v905
        %v1014 = vpack.c.b16 %v909, %v906
        %v1015 = vpack.c.b16 %v913, %v910
        %v1016 = vpack.c.b16 %v914, %v911
        %v1017 = vpack.c.b16 %v915, %v912
        %v1018 = vpack.c.b16 %v919, %v916
        %v1019 = vpack.c.b16 %v920, %v917
        %v1020 = vpack.c.b16 %v921, %v918
        %v1021 = vpack.c.b16 %v925, %v922
        %v1022 = vpack.c.b16 %v926, %v923
        %v1023 = vpack.c.b16 %v927, %v924
        %v1024 = vpack.c.b16 %v931, %v928
        %v1025 = vpack.c.b16 %v932, %v929
        %v1026 = vpack.c.b16 %v933, %v930
        %v1027 = vpack.c.b16 %v937, %v934
        %v1028 = vpack.c.b16 %v938, %v935
        %v1029 = vpack.c.b16 %v939, %v936
        %v1030 = vpack.c.b16 %v943, %v940
        %v1031 = vpack.c.b16 %v944, %v941
        %v1032 = vpack.c.b16 %v945, %v942
        %v1033 = vpack.c.b16 %v949, %v946
        %v1034 = vpack.c.b16 %v950, %v947
        %v1035 = vpack.c.b16 %v951, %v948
        %v1036 = vpack.c.b16 %v955, %v952
        %v1037 = vpack.c.b16 %v956, %v953
        %v1038 = vpack.c.b16 %v957, %v954
        %v1039 = vpack.c.b16 %v961, %v958
        %v1040 = vpack.c.b16 %v962, %v959
        %v1041 = vpack.c.b16 %v963, %v960
        %v1042 = vpack.c.b16 %v967, %v964
        %v1043 = vpack.c.b16 %v968, %v965
        %v1044 = vpack.c.b16 %v969, %v966
        %v1121 = vsel %vm509, %v602, 0
        %1123 = vmatprep.subr.bf16.mxu0 %v971
        %1124 = vmatpush1.bf16.msra.mxu0 %v970
        %1125 = vmatprep.subr.bf16.mxu0 %v974
        %1126 = vmatpush1.bf16.msra.mxu0 %v973
        %1127 = vmatprep.subr.bf16.mxu0 %v977
        %1128 = vmatpush1.bf16.msra.mxu0 %v976
        %1129 = vmatprep.subr.bf16.mxu0 %v980
        %1130 = vmatpush1.bf16.msra.mxu0 %v979
        %1131 = vmatprep.subr.bf16.mxu0 %v983
        %1132 = vmatpush1.bf16.msra.mxu0 %v982
        %1133 = vmatprep.subr.bf16.mxu0 %v986
        %1134 = vmatpush1.bf16.msra.mxu0 %v985
        %1135 = vmatprep.subr.bf16.mxu0 %v989
        %1136 = vmatpush1.bf16.msra.mxu0 %v988
        %1137 = vmatprep.subr.bf16.mxu0 %v992
        %1138 = vmatpush1.bf16.msra.mxu0 %v991
        %1139 = vmatprep.subr.bf16.mxu0 %v995
        %1140 = vmatpush1.bf16.msra.mxu0 %v994
        %1141 = vmatprep.subr.bf16.mxu0 %v998
        %1142 = vmatpush1.bf16.msra.mxu0 %v997
        %1143 = vmatprep.subr.bf16.mxu0 %v1001
        %1144 = vmatpush1.bf16.msra.mxu0 %v1000
        %1145 = vmatprep.subr.bf16.mxu0 %v1004
        %1146 = vmatpush1.bf16.msra.mxu0 %v1003
        %1147 = vmatprep.subr.bf16.mxu0 %v1007
        %1148 = vmatpush1.bf16.msra.mxu0 %v1006
        %1149 = vmatprep.subr.bf16.mxu0 %v1010
        %1150 = vmatpush1.bf16.msra.mxu0 %v1009
        %1151 = vmatprep.subr.bf16.mxu0 %v1013
        %1152 = vmatpush1.bf16.msra.mxu0 %v1012
        %1153 = vmatprep.subr.bf16.mxu0 %v1016
        %1154 = vmatpush1.bf16.msra.mxu0 %v1015
        %1155 = vmatprep.mubr.bf16.mxu0 %v600
        %1156 = vmatmul.mubr.bf16.gmra.mrb[0].mxu0 %v599
        %v1157 = vpop.f32.mrb[0].mxu0
        %v1158 = vadd.f32 %v708, %v1157
        %v1159 = vpop.f32.mrb[0].mxu0
        %v1160 = vadd.f32 %v712, %v1159
        %v1161 = vpop.f32.mrb[0].mxu0
        %v1162 = vpop.f32.mrb[0].mxu0
        %1163 = vdwg.mxu0
        %1164 = vmatprep.subr.bf16.mxu0 %v1019
        %1165 = vmatpush1.bf16.msra.mxu0 %v1018
        %1166 = vmatprep.subr.bf16.mxu0 %v1022
        %1167 = vmatpush1.bf16.msra.mxu0 %v1021
        %1168 = vmatprep.subr.bf16.mxu0 %v1025
        %1169 = vmatpush1.bf16.msra.mxu0 %v1024
        %1170 = vmatprep.subr.bf16.mxu0 %v1028
        %1171 = vmatpush1.bf16.msra.mxu0 %v1027
        %1172 = vmatprep.subr.bf16.mxu0 %v1031
        %1173 = vmatpush1.bf16.msra.mxu0 %v1030
        %1174 = vmatprep.subr.bf16.mxu0 %v1034
        %1175 = vmatpush1.bf16.msra.mxu0 %v1033
        %1176 = vmatprep.subr.bf16.mxu0 %v1037
        %1177 = vmatpush1.bf16.msra.mxu0 %v1036
        %1178 = vmatprep.subr.bf16.mxu0 %v1040
        %1179 = vmatpush1.bf16.msra.mxu0 %v1039
        %1180 = vmatprep.subr.bf16.mxu0 %v1043
        %1181 = vmatpush1.bf16.msra.mxu0 %v1042
        %1182 = vmatprep.subr.bf16.mxu0 0
        %1183 = vmatpush1.bf16.msra.mxu0 0
        %1184 = vmatprep.subr.bf16.mxu0 0
        %1185 = vmatpush1.bf16.msra.mxu0 0
        %1186 = vmatprep.subr.bf16.mxu0 0
        %1187 = vmatpush1.bf16.msra.mxu0 0
        %1188 = vmatprep.subr.bf16.mxu0 0
        %1189 = vmatpush1.bf16.msra.mxu0 0
        %1190 = vmatprep.subr.bf16.mxu0 0
        %1191 = vmatpush1.bf16.msra.mxu0 0
        %1192 = vmatprep.subr.bf16.mxu0 0
        %1193 = vmatpush1.bf16.msra.mxu0 0
        %1194 = vmatprep.subr.bf16.mxu0 0
        %1195 = vmatpush1.bf16.msra.mxu0 0
        %1196 = vmatprep.mubr.bf16.mxu0 %v1121
        %1197 = vmatmul.mubr.bf16.gmra.mrb[0].mxu0 %v601
        %v1198 = vpop.f32.mrb[0].mxu0
        %v1199 = vadd.f32 %v1158, %v1198
        %v1200 = vpop.f32.mrb[0].mxu0
        %v1201 = vadd.f32 %v1160, %v1200
        %v1202 = vpop.f32.mrb[0].mxu0
        %v1203 = vpop.f32.mrb[0].mxu0
        %1204 = vdwg.mxu0
        %1205 = vmatprep.subr.bf16.mxu0 0
        %1206 = vmatpush1.bf16.msra.mxu0 %v972
        %1207 = vmatprep.subr.bf16.mxu0 0
        %1208 = vmatpush1.bf16.msra.mxu0 %v975
        %1209 = vmatprep.subr.bf16.mxu0 0
        %1210 = vmatpush1.bf16.msra.mxu0 %v978
        %1211 = vmatprep.subr.bf16.mxu0 0
        %1212 = vmatpush1.bf16.msra.mxu0 %v981
        %1213 = vmatprep.subr.bf16.mxu0 0
        %1214 = vmatpush1.bf16.msra.mxu0 %v984
        %1215 = vmatprep.subr.bf16.mxu0 0
        %1216 = vmatpush1.bf16.msra.mxu0 %v987
        %1217 = vmatprep.subr.bf16.mxu0 0
        %1218 = vmatpush1.bf16.msra.mxu0 %v990
        %1219 = vmatprep.subr.bf16.mxu0 0
        %1220 = vmatpush1.bf16.msra.mxu0 %v993
        %1221 = vmatprep.subr.bf16.mxu0 0
        %1222 = vmatpush1.bf16.msra.mxu0 %v996
        %1223 = vmatprep.subr.bf16.mxu0 0
        %1224 = vmatpush1.bf16.msra.mxu0 %v999
        %1225 = vmatprep.subr.bf16.mxu0 0
        %1226 = vmatpush1.bf16.msra.mxu0 %v1002
        %1227 = vmatprep.subr.bf16.mxu0 0
        %1228 = vmatpush1.bf16.msra.mxu0 %v1005
        %1229 = vmatprep.subr.bf16.mxu0 0
        %1230 = vmatpush1.bf16.msra.mxu0 %v1008
        %1231 = vmatprep.subr.bf16.mxu0 0
        %1232 = vmatpush1.bf16.msra.mxu0 %v1011
        %1233 = vmatprep.subr.bf16.mxu0 0
        %1234 = vmatpush1.bf16.msra.mxu0 %v1014
        %1235 = vmatprep.subr.bf16.mxu0 0
        %1236 = vmatpush1.bf16.msra.mxu0 %v1017
        %1237 = vmatprep.mubr.bf16.mxu0 %v600
        %1238 = vmatmul.mubr.bf16.gmra.mrb[0].mxu0 %v599
        %v1239 = vpop.f32.mrb[0].mxu0
        %v1240 = vadd.f32 %v716, %v1239
        %v1241 = vpop.f32.mrb[0].mxu0
        %v1242 = vpop.f32.mrb[0].mxu0
        %v1243 = vpop.f32.mrb[0].mxu0
        %1244 = vdwg.mxu0
        %1245 = vmatprep.subr.bf16.mxu0 0
        %1246 = vmatpush1.bf16.msra.mxu0 %v1020
        %1247 = vmatprep.subr.bf16.mxu0 0
        %1248 = vmatpush1.bf16.msra.mxu0 %v1023
        %1249 = vmatprep.subr.bf16.mxu0 0
        %1250 = vmatpush1.bf16.msra.mxu0 %v1026
        %1251 = vmatprep.subr.bf16.mxu0 0
        %1252 = vmatpush1.bf16.msra.mxu0 %v1029
        %1253 = vmatprep.subr.bf16.mxu0 0
        %1254 = vmatpush1.bf16.msra.mxu0 %v1032
        %1255 = vmatprep.subr.bf16.mxu0 0
        %1256 = vmatpush1.bf16.msra.mxu0 %v1035
        %1257 = vmatprep.subr.bf16.mxu0 0
        %1258 = vmatpush1.bf16.msra.mxu0 %v1038
        %1259 = vmatprep.subr.bf16.mxu0 0
        %1260 = vmatpush1.bf16.msra.mxu0 %v1041
        %1261 = vmatprep.subr.bf16.mxu0 0
        %1262 = vmatpush1.bf16.msra.mxu0 %v1044
        %1263 = vmatprep.subr.bf16.mxu0 0
        %1264 = vmatpush1.bf16.msra.mxu0 0
        %1265 = vmatprep.subr.bf16.mxu0 0
        %1266 = vmatpush1.bf16.msra.mxu0 0
        %1267 = vmatprep.subr.bf16.mxu0 0
        %1268 = vmatpush1.bf16.msra.mxu0 0
        %1269 = vmatprep.subr.bf16.mxu0 0
        %1270 = vmatpush1.bf16.msra.mxu0 0
        %1271 = vmatprep.subr.bf16.mxu0 0
        %1272 = vmatpush1.bf16.msra.mxu0 0
        %1273 = vmatprep.subr.bf16.mxu0 0
        %1274 = vmatpush1.bf16.msra.mxu0 0
        %1275 = vmatprep.subr.bf16.mxu0 0
        %1276 = vmatpush1.bf16.msra.mxu0 0
        %1277 = vmatprep.mubr.bf16.mxu0 %v1121
        %1278 = vmatmul.mubr.bf16.gmra.mrb[0].mxu0 %v601
        %v1279 = vpop.f32.mrb[0].mxu0
        %v1280 = vadd.f32 %v1240, %v1279
        %v1281 = vpop.f32.mrb[0].mxu0
        %v1282 = vpop.f32.mrb[0].mxu0
        %v1283 = vpop.f32.mrb[0].mxu0
        %1284 = vdwg.mxu0
        %v1285 = vmax.f32 %v1199, 0.0
        %v1286 = vmax.f32 %v1201, 0.0
        %v1287 = vmax.f32 %v1280, 0.0
        %v1288 = vld [vmem:[%s449] sm:$0x7]
        %v1290 = vlaneseq
        %v1291 = vshrl.u32 %v1290, 7
        %v1292 = vsub.s32 0, %v1291
        %v1293 = vrot.slane %v1288, %v1292
        %v1294 = vlaneseq
        %v1295 = vshrl.u32 %v1294, 7
        %v1296 = vsub.s32 1, %v1295
        %v1297 = vrot.slane %v1288, %v1296
        %v1298 = vlaneseq
        %v1299 = vshrl.u32 %v1298, 7
        %v1300 = vsub.s32 2, %v1299
        %v1301 = vrot.slane %v1288, %v1300
        %v1305 = vmul.f32 %v1285, %v1293
        %v1306 = vmul.f32 %v1286, %v1297
        %v1307 = vmul.f32 %v1287, %v1301
        %v1308 = vadd.f32 %v1305, %v1306
        %vm1309 = vcmask 359424
        %v1310 = vsel %vm1309, %v1307, 0.0
        %v1311 = vadd.f32 %v1308, %v1310
        %1312 = vadd.xlane.f32.xlu0 %v1311
        %v1313 = vpop.xlane.xlu0 %1312
        %v1314 = vld [vmem:[%s452] sm:$0x1]
        %v1316 = vlaneseq
        %v1317 = vshrl.u32 %v1316, 7
        %v1318 = vsub.s32 0, %v1317
        %v1319 = vrot.slane %v1314, %v1318
        %v1321 = vadd.f32 %v1313, %v1319
        %1323 = vset.pattern.permute.xlu0 0
        %1324 = vperm.xlu0 %1323, %v1321
        %v1325 = vpop.permute.xlu0 %1324
        %1327 = vst [vmem:[%s459] sm:$0xff] %v1325
        %p1328 = scmp.lt.s32.totalorder %s29, 1
        %s1329 = scalar_select %p1328, %s29, 1
        %p1330 = scmp.lt.s32.totalorder %s30, 0
        %s1331 = scalar_select %p1330, %s30, 0
        %s1332 = sadd.s32 %s1331, %s1329
        %s1333 = smul.addr %s1332, 8
        %s1334 = scalar_lea.vmem %s7, %s1333
        // Predicated region
        $region65: #{twin_critic_forward.1} parent=47 // pred_check
          %p1335 = pneg %p239
        $region66: #{twin_critic_forward.1} parent=47 // pred_check_branch
          %1337 = sbr.rel (%p1335) target = $region68
        $region67: #{twin_critic_forward.1} parent=47 // pred_region
          _
        $region68: #{twin_critic_forward.1} parent=47 // pred_fallthru
          _
      $region48: #{twin_critic_forward.1} parent=5 // pred_fallthru
        _
      %p1338 = scmp.le.s32.totalorder 2, %s20
      // Predicated region
      $region69: #{twin_critic_forward.1} parent=5 // pred_check
        %p1339 = pneg %p1338
      $region70: #{twin_critic_forward.1} parent=5 // pred_check_branch
        %1341 = sbr.rel (%p1339) target = $region72
      $region71: #{twin_critic_forward.1} parent=5 // pred_region
        %s1342 = ssub.s32 %s20, 2
        // Predicated region
        $region73: #{twin_critic_forward.1} parent=71 // pred_check
          %p1343 = pneg %p245
        $region74: #{twin_critic_forward.1} parent=71 // pred_check_branch
          %1345 = sbr.rel (%p1343) target = $region76
        $region75: #{twin_critic_forward.1} parent=71 // pred_region
          %p1346 = scmp.lt.s32.totalorder %s31, 1
          %s1347 = scalar_select %p1346, %s31, 1
          %p1348 = scmp.lt.s32.totalorder %s32, 0
          %s1349 = scalar_select %p1348, %s32, 0
          %s1350 = sadd.s32 %s1349, %s1347
          %s1351 = smul.addr %s1350, 8
          %s1352 = scalar_lea.vmem %s7, %s1351
        $region76: #{twin_critic_forward.1} parent=71 // pred_fallthru
          _
      $region72: #{twin_critic_forward.1} parent=5 // pred_fallthru
        _
    $region6: #{twin_critic_forward.1} parent=1 // loop_footer
      %s24 = sadd.s32 1, %s20
    $region7: #{twin_critic_forward.1} parent=1 // loop_footer_branch
      %19 = sbr.rel target = $region3
    $region8: #{twin_critic_forward.1} parent=1 // loop_exit
      _
    %1353 = vsyncpa [#allocation3], 1
    %s1354 = scalar_lea.sflag [#allocation3], 1
    %1355 = vsyncpa %s1354, 1
    %1356 = vsyncpa [#allocation5], 1
    %s1357 = scalar_lea.sflag [#allocation5], 1
    %1358 = vsyncpa %s1357, 1
    %1359 = vsyncpa [#allocation8], 1
    %s1360 = scalar_lea.sflag [#allocation8], 1
    %1361 = vsyncpa %s1360, 1

</llo_original>
